<compile_context>
chip_gen: v7x
topology: tpu7x:2x2x1
jax: 0.10.0
libtpu: 0.0.40
codegen_flags: <defaults>
</compile_context>

<pallas_src>
import functools

import jax
import jax.numpy as jnp
import numpy as np
from jax.experimental import pallas as pl
from jax.experimental.pallas import tpu as pltpu


def _round_up(x: int, m: int) -> int:
    return ((x + m - 1) // m) * m


def prepare_table(table):
    """Pad the feature dim to a lane-dense multiple of 128.

    Do this ONCE at parameter-init time so the full-table pad (an HBM
    read+write of the whole table) is not paid on every forward.
    """
    v, d = table.shape
    d_pad = _round_up(d, 128)
    if d_pad != d:
        table = jnp.pad(table, ((0, 0), (0, d_pad - d)))
    return table


def _vmem_need(tile_n: int, v_chunk: int, d_pad: int) -> int:
    f32 = 4
    table_buf = 2 * v_chunk * d_pad * f32      # double-buffered table chunk (conservative)
    out_buf = 2 * tile_n * d_pad * f32         # double-buffered output tile
    acc = tile_n * d_pad * f32                 # f32 accumulator scratch
    idx_buf = 2 * tile_n * 128 * f32           # (tile_n,1) i32 tile lane-pads to 128
    staging = 3 * tile_n * v_chunk * f32       # iota / compare / one-hot temporaries
    return table_buf + out_buf + acc + idx_buf + staging + (2 << 20)


def _pick_tiling(v: int, d_pad: int, n8: int, tile_n: int, vmem_cap_bytes: int):
    """Pick (tile_n, v_chunk) so everything fits the per-core VMEM budget."""
    tn = min(_round_up(tile_n, 8), n8)
    v8 = _round_up(v, 8)
    while True:
        vc = v8
        while _vmem_need(tn, vc, d_pad) > vmem_cap_bytes and vc > 8:
            vc = _round_up(max(8, vc // 2), 8)
        if _vmem_need(tn, vc, d_pad) <= vmem_cap_bytes or tn <= 64:
            return tn, vc, _vmem_need(tn, vc, d_pad)
        tn = max(64, _round_up(tn // 2, 8))


def _embed_kernel(idx_ref, table_ref, out_ref, acc_ref, *,
                  v_chunk: int, num_v_chunks: int, normalized: bool, eps: float):
    """One-hot-matmul gather over vocab chunks + fused block L2-normalize.

    idx_ref  : VMEM i32[TILE_N, 1]      indices for this row tile (k-constant)
    table_ref: VMEM f32[V_CHUNK, D_pad] current vocab chunk of the table
    out_ref  : VMEM f32[TILE_N, D_pad]  lane-dense output tile (written on last k)
    acc_ref  : VMEM f32[TILE_N, D_pad]  accumulator (used when num_v_chunks > 1)
    """
    k = pl.program_id(1)
    tile_n = out_ref.shape[0]

    idx = idx_ref[...]                                             # (TILE_N, 1) i32
    local = idx if num_v_chunks == 1 else idx - k * v_chunk        # chunk-local index
    iota = jax.lax.broadcasted_iota(jnp.int32, (tile_n, v_chunk), 1)
    onehot = (iota == local).astype(table_ref.dtype)               # exact 0/1

    # MXU gather: at most one nonzero per row within this chunk.
    part = jnp.dot(onehot, table_ref[...], preferred_element_type=jnp.float32)

    def _finish(rows):
        if normalized:
            # F.normalize: x / max(||x||, eps)  ==  x * rsqrt(max(||x||^2, eps^2))
            ssq = jnp.sum(rows * rows, axis=-1, keepdims=True)
            rows = rows * jax.lax.rsqrt(jnp.maximum(ssq, eps * eps))
        out_ref[...] = rows.astype(out_ref.dtype)

    if num_v_chunks == 1:
        _finish(part)
    else:
        @pl.when(k == 0)
        def _():
            acc_ref[...] = part

        @pl.when(k > 0)
        def _():
            acc_ref[...] = acc_ref[...] + part

        @pl.when(k == num_v_chunks - 1)
        def _():
            _finish(acc_ref[...])


def embedding_forward(obs, table, *, num_out=None, normalized=True,
                      random_vectors=None, num_random_embeddings=None,
                      tile_n=512, eps=1e-12, vmem_cap_bytes=40 << 20,
                      force_pallas=False):
    """JAX wrapper mirroring Embedding.forward({'obs': obs}).

    obs   : integer indices, any shape
    table : (num_in, num_out) or pre-padded (num_in, round_up(num_out,128)) weight
            (pass num_out explicitly when pre-padded via prepare_table()).
    """
    if random_vectors is not None:
        # Random-embedding branch: lookup into random_embedding_vectors.
        # TODO(synk): jnp '%' differs from torch.fmod for negative indices.
        idx = (obs.reshape(-1) % num_random_embeddings).astype(jnp.int32)
        lut = random_vectors
    else:
        idx = obs.reshape(-1).astype(jnp.int32)
        lut = table

    v, d_stored = lut.shape
    d = int(num_out) if num_out is not None else d_stored
    d_pad = _round_up(d, 128)
    if d_stored < d_pad:
        # Prefer prepare_table() at init time so this pad is hoisted out of the step.
        lut = jnp.pad(lut, ((0, 0), (0, d_pad - d_stored)))

    n = idx.shape[0]

    # Tiny-shape dispatch: a Pallas call here is one grid step of pure
    # launch+DMA latency with an almost-idle MXU; let XLA gather instead.
    if not force_pallas and n * d_pad <= 16 * 1024:
        rows = lut[idx]
        if normalized:
            ssq = jnp.sum(rows * rows, axis=-1, keepdims=True)
            rows = rows * jax.lax.rsqrt(jnp.maximum(ssq, eps * eps))
        return rows[:, :d].reshape(obs.shape + (d,))

    n8 = _round_up(max(n, 8), 8)
    tn, v_chunk, vmem_need = _pick_tiling(v, d_pad, n8, tile_n, vmem_cap_bytes)
    n_pad = _round_up(n8, tn)

    v_pad = _round_up(_round_up(v, 8), v_chunk)
    if v_pad != v:
        lut = jnp.pad(lut, ((0, v_pad - v), (0, 0)))   # zero rows are never selected
    num_v_chunks = v_pad // v_chunk

    idx_p = jnp.pad(idx, (0, n_pad - n)).reshape(n_pad, 1)

    grid = (n_pad // tn, num_v_chunks)

    kernel = functools.partial(_embed_kernel, v_chunk=v_chunk,
                               num_v_chunks=num_v_chunks,
                               normalized=normalized, eps=eps)

    cost = pl.CostEstimate(
        flops=2 * n_pad * v_pad * d_pad,
        transcendentals=n_pad if normalized else 0,
        bytes_accessed=4 * (v_pad * d_pad + n_pad * d_pad + n_pad),
    )

    out = pl.pallas_call(
        kernel,
        out_shape=jax.ShapeDtypeStruct((n_pad, d_pad), lut.dtype),
        grid_spec=pltpu.PrefetchScalarGridSpec(
            num_scalar_prefetch=0,
            grid=grid,
            in_specs=[
                # idx tile: constant over the k axis -> fetched once per row tile.
                pl.BlockSpec((tn, 1), lambda i, k: (i, 0)),
                # table chunk; constant index_map when num_v_chunks == 1
                # (fetched exactly once), cycles over chunks otherwise.
                pl.BlockSpec((v_chunk, d_pad), lambda i, k: (k, 0)),
            ],
            out_specs=pl.BlockSpec((tn, d_pad), lambda i, k: (i, 0)),
            scratch_shapes=[pltpu.VMEM((tn, d_pad), jnp.float32)],
        ),
        compiler_params=pltpu.CompilerParams(
            dimension_semantics=("parallel", "arbitrary"),
            vmem_limit_bytes=int(max(vmem_need, 8 << 20))),
        cost_estimate=cost,
    )(idx_p, lut)

    return out[:n, :d].reshape(obs.shape + (d,))


if __name__ == "__main__":
    key = jax.random.PRNGKey(0)
    k_w, k_idx, k_w2, k_idx2, k_r = jax.random.split(key, 5)

    # --- Test 1: module-consistent small shapes (num_in=16, num_out=32, obs (2,8)) ---
    num_in, num_out = 16, 32
    B, S = 2, 8
    emb_weight = jax.random.normal(k_w, (num_in, num_out), dtype=jnp.float32)
    emb_weight_p = prepare_table(emb_weight)            # pad hoisted to init time
    obs = jax.random.randint(k_idx, (B, S), 0, num_in, dtype=jnp.int32)

    out = embedding_forward(obs, emb_weight_p, num_out=num_out,
                            normalized=True, force_pallas=True)
    out = jax.block_until_ready(out)

    ref = emb_weight[obs]
    ref = ref / jnp.maximum(jnp.sqrt(jnp.sum(ref * ref, -1, keepdims=True)), 1e-12)
    assert out.shape == (B, S, num_out), out.shape
    np.testing.assert_allclose(np.asarray(out), np.asarray(ref), rtol=1e-5, atol=1e-5)

    # --- Test 2: larger shapes exercising multi-row-tile grid + vocab chunking ---
    V2, D2 = 3000, 200
    w2 = jax.random.normal(k_w2, (V2, D2), dtype=jnp.float32)
    obs2 = jax.random.randint(k_idx2, (3, 400), 0, V2, dtype=jnp.int32)
    out2 = embedding_forward(obs2, w2, normalized=True, tile_n=512,
                             vmem_cap_bytes=16 << 20)   # small cap -> chunked path
    out2 = jax.block_until_ready(out2)
    ref2 = w2[obs2]
    ref2 = ref2 / jnp.maximum(jnp.sqrt(jnp.sum(ref2 * ref2, -1, keepdims=True)), 1e-12)
    np.testing.assert_allclose(np.asarray(out2), np.asarray(ref2), rtol=1e-5, atol=1e-5)

    # --- Test 3: random-embedding branch ---
    num_rand = 7
    rand_vecs = jax.random.uniform(k_r, (num_rand, num_out), dtype=jnp.float32)
    out3 = embedding_forward(obs, emb_weight_p, num_out=num_out, normalized=True,
                             random_vectors=rand_vecs,
                             num_random_embeddings=num_rand, force_pallas=True)
    out3 = jax.block_until_ready(out3)
    ref3 = rand_vecs[obs % num_rand]
    ref3 = ref3 / jnp.maximum(jnp.sqrt(jnp.sum(ref3 * ref3, -1, keepdims=True)), 1e-12)
    np.testing.assert_allclose(np.asarray(out3), np.asarray(ref3), rtol=1e-5, atol=1e-5)

    print("KERNEL_OK")
</pallas_src>

<mosaic_0001>
module attributes {stable_mosaic.version = 11 : i64} {
  func.func @_embed_kernel(%arg0: i32, %arg1: i32, %arg2: memref<16x1xi32, #tpu.memory_space<vmem>>, %arg3: memref<16x128xf32, #tpu.memory_space<vmem>>, %arg4: memref<16x128xf32, #tpu.memory_space<vmem>>, %arg5: memref<16x128xf32, #tpu.memory_space<vmem>>) attributes {dimension_semantics = [#tpu.dimension_semantics<parallel>, #tpu.dimension_semantics<arbitrary>], iteration_bounds = array<i64: 1, 1>, scalar_prefetch = 0 : i64, scratch_operands = 1 : i64, tpu.core_type = #tpu.core_type<tc>, window_params = [{transform_indices = @transform_0, window_bounds = array<i64: 16, 1>}, {transform_indices = @transform_1, window_bounds = array<i64: 16, 128>}, {transform_indices = @transform_2, window_bounds = array<i64: 16, 128>}]} {
    %c0 = arith.constant 0 : index
    %c0_0 = arith.constant 0 : index
    %0 = vector.load %arg2[%c0, %c0_0] : memref<16x1xi32, #tpu.memory_space<vmem>>, vector<16x1xi32>
    %1 = tpu.iota {dimensions = array<i32: 1>} : vector<16x16xi32>
    %2 = vector.broadcast %0 : vector<16x1xi32> to vector<16x16xi32>
    %3 = arith.cmpi eq, %1, %2 : vector<16x16xi32>
    %4 = arith.extui %3 : vector<16x16xi1> to vector<16x16xi32>
    %5 = arith.sitofp %4 : vector<16x16xi32> to vector<16x16xf32>
    %c0_1 = arith.constant 0 : index
    %c0_2 = arith.constant 0 : index
    %6 = vector.load %arg3[%c0_1, %c0_2] : memref<16x128xf32, #tpu.memory_space<vmem>>, vector<16x128xf32>
    %cst = arith.constant dense<0.000000e+00> : vector<16x128xf32>
    %7 = tpu.matmul %5, %6, %cst {dimension_numbers = #tpu.dot_dimension_numbers<[1], [0], [0], [1], [0, 0, 1, 1], [], []>} : vector<16x16xf32>, vector<16x128xf32>, vector<16x128xf32> -> vector<16x128xf32>
    %8 = arith.mulf %7, %7 : vector<16x128xf32>
    %cst_3 = arith.constant dense<0.000000e+00> : vector<16xf32>
    %9 = vector.multi_reduction <add>, %8, %cst_3 [1] : vector<16x128xf32> to vector<16xf32>
    %10 = vector.shape_cast %9 : vector<16xf32> to vector<16x1xf32>
    %cst_4 = arith.constant 1.000000e-24 : f32
    %11 = vector.broadcast %cst_4 : f32 to vector<16x1xf32>
    %12 = arith.maximumf %10, %11 : vector<16x1xf32>
    %13 = math.rsqrt %12 : vector<16x1xf32>
    %14 = vector.broadcast %13 : vector<16x1xf32> to vector<16x128xf32>
    %15 = arith.mulf %7, %14 : vector<16x128xf32>
    %c0_5 = arith.constant 0 : index
    %c0_6 = arith.constant 0 : index
    %16 = vector.load %arg4[%c0_5, %c0_6] : memref<16x128xf32, #tpu.memory_space<vmem>>, vector<16x128xf32>
    tpu.vector_store %arg4[%c0_5, %c0_6], %15 {strides = array<i32>} : memref<16x128xf32, #tpu.memory_space<vmem>>, vector<16x128xf32>,
    return
  }
  func.func @transform_0(%arg0: i32, %arg1: i32) -> (i32, i32) {
    %c0_i32 = arith.constant 0 : i32
    %c0_i32_0 = arith.constant 0 : i32
    return %arg0, %c0_i32 : i32, i32
  }
  func.func @transform_1(%arg0: i32, %arg1: i32) -> (i32, i32) {
    %c0_i32 = arith.constant 0 : i32
    %c0_i32_0 = arith.constant 0 : i32
    return %arg1, %c0_i32 : i32, i32
  }
  func.func @transform_2(%arg0: i32, %arg1: i32) -> (i32, i32) {
    %c0_i32 = arith.constant 0 : i32
    %c0_i32_0 = arith.constant 0 : i32
    return %arg0, %c0_i32 : i32, i32
  }
}

</mosaic_0001>

<llo_original>
// kernel: tpu_custom_call.1
$region0: #{tpu_custom_call.1}
  #allocation0 [shape = 'u32[]', space=smem, size = 0x4, offset = 0x4, fixed_abs, tag = 'smem constant byte address 0x4 - core index']
  #allocation1 [shape = 'u32[144,128]{1,0:T(1,128)}', space=vmem, size = 0x12000, scoped, tag = 'internal scratch']
  #allocation2 [shape = 'f32[16,128]{1,0:T(8,128)}', space=vmem, size = 0x2000, scoped, tag = 'scratch operand']
  %s0 = inlined_call_operand.vmem [shape: s32[16,1], index: 0, kind: input, shape index: {}]
  %s1 = inlined_call_operand.vmem [shape: f32[16,128], index: 1, kind: input, shape index: {}]
  %s2 = inlined_call_operand.hbm [shape: f32[16,128], index: 2, kind: output, shape index: {}]
  %s3 = sld [smem:[#allocation0]]
  $region18: #{tpu_custom_call.1} parent=0
    _
  %s5 = ssub.s32 1, %s3
  %s6 = scalar_select 0, %s5, %s3
  $region1: #{tpu_custom_call.1} parent=0
    #allocation3 [shape = 'u8[8192]{0}', space=vmem, size = 0x2000, scoped, tag = 'output window, operand 0, single buffered']
    #allocation4 [shape = 's32[1]{0}', space=sflag, size = 0x4, scoped, tag = 'scoped memory for tpu_custom_call.1']
    %7 = vsyncpa [#allocation4], 0
    // Predicated region
    $region2: #{tpu_custom_call.1} parent=1 // pred_check
      _
    $region3: #{tpu_custom_call.1} parent=1 // pred_check_branch
      %9 = sbr.rel (0) target = $region5
    $region4: #{tpu_custom_call.1} parent=1 // pred_region
      _
    $region5: #{tpu_custom_call.1} parent=1 // pred_fallthru
      _
    // Predicated region
    $region6: #{tpu_custom_call.1} parent=1 // pred_check
      _
    $region7: #{tpu_custom_call.1} parent=1 // pred_check_branch
      %11 = sbr.rel (0) target = $region9
    $region8: #{tpu_custom_call.1} parent=1 // pred_region
      _
    $region9: #{tpu_custom_call.1} parent=1 // pred_fallthru
      _
    %v12 = vld [vmem:[%s0] sm:$0xff]
    %v13 = vld [vmem:[%s0 + $0x8] sm:$0xff]
    %v14 = vlaneseq
    %v15 = vand.u32 %v14, 127
    %16 = vset.pattern.permute.xlu0 0
    %17 = vperm.xlu0 %16, %v12
    %v18 = vpop.permute.xlu0 %17
    %19 = vset.pattern.permute.xlu0 0
    %20 = vperm.xlu0 %19, %v13
    %v21 = vpop.permute.xlu0 %20
    %vm22 = vcmp.eq.s32.totalorder %v15, %v18
    %vm23 = vcmp.eq.s32.totalorder %v15, %v21
    %v24 = vsel %vm22, 1, 0
    %v25 = vsel %vm23, 1, 0
    %v26 = vcvt.s32.f32 %v24
    %v27 = vcvt.s32.f32 %v25
    %v28 = vld [vmem:[%s1] sm:$0xff]
    %v29 = vld [vmem:[%s1 + $0x8] sm:$0xff]
    %vm30 = vcmask 130048
    %v32 = vsel %vm30, %v26, 0
    %v35 = vsel %vm30, %v27, 0
    %37 = vmatprep.subr.mxu0 0.0
    %38 = vmatpush1.msra.mxu0 %v28
    %39 = vmatprep.subr.mxu0 0.0
    %40 = vmatpush1.msra.mxu0 %v29
    %41 = vmatprep.subr.mxu0 0.0
    %42 = vmatpush1.msra.mxu0 0.0
    %43 = vmatprep.subr.mxu0 0.0
    %44 = vmatpush1.msra.mxu0 0.0
    %45 = vmatprep.subr.mxu0 0.0
    %46 = vmatpush1.msra.mxu0 0.0
    %47 = vmatprep.subr.mxu0 0.0
    %48 = vmatpush1.msra.mxu0 0.0
    %49 = vmatprep.subr.mxu0 0.0
    %50 = vmatpush1.msra.mxu0 0.0
    %51 = vmatprep.subr.mxu0 0.0
    %52 = vmatpush1.msra.mxu0 0.0
    %53 = vmatprep.subr.mxu0 0.0
    %54 = vmatpush1.msra.mxu0 0.0
    %55 = vmatprep.subr.mxu0 0.0
    %56 = vmatpush1.msra.mxu0 0.0
    %57 = vmatprep.subr.mxu0 0.0
    %58 = vmatpush1.msra.mxu0 0.0
    %59 = vmatprep.subr.mxu0 0.0
    %60 = vmatpush1.msra.mxu0 0.0
    %61 = vmatprep.subr.mxu0 0.0
    %62 = vmatpush1.msra.mxu0 0.0
    %63 = vmatprep.subr.mxu0 0.0
    %64 = vmatpush1.msra.mxu0 0.0
    %65 = vmatprep.subr.mxu0 0.0
    %66 = vmatpush1.msra.mxu0 0.0
    %67 = vmatprep.subr.mxu0 0.0
    %68 = vmatpush1.msra.mxu0 0.0
    %69 = vmatprep.subr.mxu0 0.0
    %70 = vmatpush1.msra.mxu0 0.0
    %71 = vmatprep.subr.mxu0 0.0
    %72 = vmatpush1.msra.mxu0 0.0
    %73 = vmatprep.subr.mxu0 0.0
    %74 = vmatpush1.msra.mxu0 0.0
    %75 = vmatprep.subr.mxu0 0.0
    %76 = vmatpush1.msra.mxu0 0.0
    %77 = vmatprep.subr.mxu0 0.0
    %78 = vmatpush1.msra.mxu0 0.0
    %79 = vmatprep.subr.mxu0 0.0
    %80 = vmatpush1.msra.mxu0 0.0
    %81 = vmatprep.subr.mxu0 0.0
    %82 = vmatpush1.msra.mxu0 0.0
    %83 = vmatprep.subr.mxu0 0.0
    %84 = vmatpush1.msra.mxu0 0.0
    %85 = vmatprep.subr.mxu0 0.0
    %86 = vmatpush1.msra.mxu0 0.0
    %87 = vmatprep.subr.mxu0 0.0
    %88 = vmatpush1.msra.mxu0 0.0
    %89 = vmatprep.subr.mxu0 0.0
    %90 = vmatpush1.msra.mxu0 0.0
    %91 = vmatprep.subr.mxu0 0.0
    %92 = vmatpush1.msra.mxu0 0.0
    %93 = vmatprep.subr.mxu0 0.0
    %94 = vmatpush1.msra.mxu0 0.0
    %95 = vmatprep.subr.mxu0 0.0
    %96 = vmatpush1.msra.mxu0 0.0
    %97 = vmatprep.subr.mxu0 0.0
    %98 = vmatpush1.msra.mxu0 0.0
    %99 = vmatprep.subr.mxu0 0.0
    %100 = vmatpush1.msra.mxu0 0.0
    %101 = vmatprep.mubr.f32.mxu0 0.0
    %102 = vmatmul.mubr.f32.gmra.mrb[0].mxu0 %v32
    %v103 = vpop.f32.mrb[0].mxu0
    %v104 = vadd.f32 0.0, %v103
    %v105 = vpop.f32.mrb[0].mxu0
    %106 = vmatprep.mubr.f32.mxu0 0.0
    %107 = vmatmul.mubr.f32.gmra.mrb[0].mxu0 %v35
    %v108 = vpop.f32.mrb[0].mxu0
    %v109 = vadd.f32 0.0, %v108
    %v110 = vpop.f32.mrb[0].mxu0
    %111 = vdwg.mxu0
    %v112 = vmul.f32 %v104, %v104
    %v113 = vmul.f32 %v109, %v109
    %114 = vadd.xlane.f32.xlu0 %v112
    %v115 = vpop.xlane.xlu0 %114
    %116 = vadd.xlane.f32.xlu0 %v113
    %v117 = vpop.xlane.xlu0 %116
    %v118 = vmax.f32 %v115, 1e-24
    %v119 = vmax.f32 %v117, 1e-24
    %v120 = vrsqrt.pop %v118
    %v121 = vrsqrt.pop %v119
    %v122 = vmul.f32 %v104, %v120
    %v123 = vmul.f32 %v109, %v121
    %124 = vst [vmem:[#allocation3] sm:$0xff] %v122
    %125 = vst [vmem:[#allocation3 + $0x8] sm:$0xff] %v123
    // Predicated region
    $region10: #{tpu_custom_call.1} parent=1 // pred_check
      _
    $region11: #{tpu_custom_call.1} parent=1 // pred_check_branch
      %127 = sbr.rel (0) target = $region13
    $region12: #{tpu_custom_call.1} parent=1 // pred_region
      %s129 = ssub.s32 256, 256
      %130 = vsyncadd [#allocation4], %s129
      %s131 = sshll.u32 [#allocation3], 4
      %s132 = int_to_ptr.vmem [resolvable:$true] %s131
      %137 = dma.vmem_to_hbm [thread:$0]  %s132, 256, %s2, [#allocation4], 128, 128, 8
    $region13: #{tpu_custom_call.1} parent=1 // pred_fallthru
      _
    // Predicated region
    $region14: #{tpu_custom_call.1} parent=1 // pred_check
      _
    $region15: #{tpu_custom_call.1} parent=1 // pred_check_branch
      %139 = sbr.rel (0) target = $region17
    $region16: #{tpu_custom_call.1} parent=1 // pred_region
      %140 = dma.done [#allocation4], 256
    $region17: #{tpu_custom_call.1} parent=1 // pred_fallthru
      _
    %141 = vsyncpa [#allocation4], 1

</llo_original>
